<compile_context>
chip_gen: v7x
topology: tpu7x:2x2x1
jax: 0.10.0
libtpu: 0.0.40
codegen_flags: <defaults>
</compile_context>

<pallas_src>
import functools
import math

import jax
import jax.numpy as jnp
from jax.experimental import pallas as pl
from jax.experimental.pallas import tpu as pltpu


def _round_up(v, m):
    return ((v + m - 1) // m) * m


def _pick_tile(n_pad, max_tile):
    """Largest multiple of 128 that divides n_pad and is <= max_tile."""
    q = n_pad // 128
    d = max(max_tile // 128, 1)
    while q % d != 0:
        d -= 1
    return 128 * d


def _make_kernel(tk, resident_operand, project):
    """Streaming adjacency matmul.

    project=True : acc += adj_tile @ x_aug_tile ; finalize: out = acc @ wT_aug
    project=False: out += adj_tile @ support_tile   (support precomputed)
    """

    def _operand_block(m_ref, k):
        if resident_operand:
            start = pl.multiple_of(k * tk, tk)
            return m_ref[pl.ds(start, tk), :]
        return m_ref[...]

    if project:
        def kernel(adj_ref, m_ref, wT_ref, out_ref, acc_ref):
            k = pl.program_id(1)

            @pl.when(k == 0)
            def _init():
                acc_ref[...] = jnp.zeros_like(acc_ref)

            # (N^2 * F_in_pad) streaming term; MXU, f32 accumulation.
            acc_ref[...] += jnp.dot(adj_ref[...], _operand_block(m_ref, k),
                                    preferred_element_type=jnp.float32)

            @pl.when(k == pl.num_programs(1) - 1)
            def _finalize():
                # f32 accumulator @ f32 W^T (bias row already folded in).
                out_ref[...] = jnp.dot(acc_ref[...], wT_ref[...],
                                       preferred_element_type=jnp.float32
                                       ).astype(out_ref.dtype)

        return kernel

    def kernel(adj_ref, m_ref, out_ref):
        k = pl.program_id(1)

        @pl.when(k == 0)
        def _init():
            out_ref[...] = jnp.zeros_like(out_ref)

        # Output block is resident across the k reduction axis -> accumulate in place.
        out_ref[...] += jnp.dot(adj_ref[...], _operand_block(m_ref, k),
                                preferred_element_type=jnp.float32)

    return kernel


@functools.partial(jax.jit, static_argnames=("use_bf16", "max_tile"))
def graph_convolution(x, weight, bias, adj, *, use_bf16=True, max_tile=512):
    """Pallas equivalent of GraphConvolution.forward(input, propagation_adj).

    support = x @ W^T + b ; output = adj @ support ; returned as (1, N*F_out).

    use_bf16: stream adj (and x / support) through the MXU in bf16 with f32
    accumulation (W^T, bias, accumulators stay f32). Lossy vs exact f32 for
    adjacencies with wide dynamic range, but ~2x less HBM traffic on a
    bandwidth-bound kernel. Set False for an all-f32 path.
    """
    n, f_in = x.shape
    f_out, f_in_w = weight.shape
    assert f_in == f_in_w
    assert adj.shape == (n, n)

    stream_dtype = jnp.bfloat16 if use_bf16 else jnp.float32
    stream_it = jnp.dtype(stream_dtype).itemsize

    has_bias = bias is not None
    f_in_aug = f_in + (1 if has_bias else 0)          # ones column for the bias fold
    f_in_pad = _round_up(f_in_aug, 128)
    f_out_pad = _round_up(f_out, 128)

    # ---- tiling: minimal padding of N -------------------------------------
    if n <= max_tile:
        n_pad = _round_up(n, 8)
        tm = tk = n_pad                                # single full-dim block
    else:
        n_pad = _round_up(n, 128)
        tm = tk = _pick_tile(n_pad, max_tile)

    # ---- adjacency (streamed operand; cast, pad only if needed) -----------
    adj_p = adj.astype(stream_dtype)
    if n_pad != n:
        adj_p = jnp.pad(adj_p, ((0, n_pad - n), (0, n_pad - n)))

    # ---- shape-dependent dispatch ------------------------------------------
    # Project-after (stream [x|1], finalize with W^T) wins when F_in <= F_out;
    # otherwise precompute the small support = x @ W^T + b and stream adj
    # against the narrower f_out_pad-wide operand.
    project_in_kernel = f_in_pad <= f_out_pad

    if project_in_kernel:
        width = f_in_pad
        m_p = jnp.zeros((n_pad, width), stream_dtype)
        m_p = m_p.at[:n, :f_in].set(x.astype(stream_dtype))
        if has_bias:
            m_p = m_p.at[:n, f_in].set(jnp.ones((n,), stream_dtype))
        wT_p = jnp.zeros((f_in_pad, f_out_pad), jnp.float32)
        wT_p = wT_p.at[:f_in, :f_out].set(weight.T.astype(jnp.float32))
        if has_bias:
            wT_p = wT_p.at[f_in, :f_out].set(bias.astype(jnp.float32))
    else:
        width = f_out_pad
        support = jnp.dot(x.astype(jnp.float32), weight.T.astype(jnp.float32),
                          preferred_element_type=jnp.float32)
        if has_bias:
            support = support + bias.astype(jnp.float32)
        m_p = jnp.zeros((n_pad, width), stream_dtype)
        m_p = m_p.at[:n, :f_out].set(support.astype(stream_dtype))
        wT_p = None

    # Keep the streamed feature operand resident in VMEM when small enough
    # (budgeted at 8 MiB incl. double buffering -> safe on v7x's 64 MiB VMEM).
    resident_operand = (2 * n_pad * width * stream_it) <= (8 * 1024 * 1024)

    grid = (n_pad // tm, n_pad // tk)

    in_specs = [pl.BlockSpec((tm, tk), lambda i, k: (i, k))]          # adj tile
    if resident_operand:
        in_specs.append(pl.BlockSpec((n_pad, width), lambda i, k: (0, 0)))
    else:
        in_specs.append(pl.BlockSpec((tk, width), lambda i, k: (k, 0)))
    scratch = []
    if project_in_kernel:
        in_specs.append(pl.BlockSpec((f_in_pad, f_out_pad), lambda i, k: (0, 0)))
        scratch.append(pltpu.VMEM((tm, f_in_pad), jnp.float32))       # adj @ [x|1]

    flops = 2 * n_pad * n_pad * width
    bytes_accessed = (n_pad * n_pad * stream_it          # adj, read once
                      + n_pad * width * stream_it        # resident/streamed operand
                      + n_pad * f_out_pad * 4)           # output
    if project_in_kernel:
        flops += 2 * n_pad * f_in_pad * f_out_pad
        bytes_accessed += f_in_pad * f_out_pad * 4

    grid_spec = pltpu.PrefetchScalarGridSpec(
        num_scalar_prefetch=0,
        grid=grid,
        in_specs=in_specs,
        out_specs=pl.BlockSpec((tm, f_out_pad), lambda i, k: (i, 0)),
        scratch_shapes=scratch,
    )

    kernel = _make_kernel(tk, resident_operand, project_in_kernel)
    operands = (adj_p, m_p, wT_p) if project_in_kernel else (adj_p, m_p)

    out_padded = pl.pallas_call(
        kernel,
        out_shape=jax.ShapeDtypeStruct((n_pad, f_out_pad), jnp.float32),
        grid_spec=grid_spec,
        compiler_params=pltpu.CompilerParams(
            dimension_semantics=("parallel", "arbitrary")),
        cost_estimate=pl.CostEstimate(flops=int(flops), transcendentals=0,
                                      bytes_accessed=int(bytes_accessed)),
    )(*operands)

    # Slice off padding; matches `output.view(1, -1)`.
    return out_padded[:n, :f_out].reshape(1, n * f_out)


if __name__ == "__main__":
    def make_inputs(key, n, f_in, f_out):
        k_x, k_adj, k_w, k_b = jax.random.split(key, 4)
        x = jax.random.normal(k_x, (n, f_in), dtype=jnp.float32)
        adj = jax.random.normal(k_adj, (n, n), dtype=jnp.float32)
        bound = 1.0 / math.sqrt(f_in)
        w = jax.random.uniform(k_w, (f_out, f_in), minval=-bound, maxval=bound,
                               dtype=jnp.float32)
        b = jax.random.uniform(k_b, (f_out,), minval=-bound, maxval=bound,
                               dtype=jnp.float32)
        return x, w, b, adj

    def reference(x, w, b, adj):
        support = jnp.dot(x, w.T, precision=jax.lax.Precision.HIGHEST) + b
        return jnp.dot(adj, support,
                       precision=jax.lax.Precision.HIGHEST).reshape(1, -1)

    # 1) Small module-like shapes, f32 path (single full-dim block, project-after).
    N, F_IN, F_OUT = 16, 32, 64
    x, w, b, adj = make_inputs(jax.random.PRNGKey(0), N, F_IN, F_OUT)
    out = jax.block_until_ready(graph_convolution(x, w, b, adj, use_bf16=False))
    ref = reference(x, w, b, adj)
    assert out.shape == (1, N * F_OUT)
    assert jnp.allclose(out, ref, atol=1e-4, rtol=1e-4)

    # 2) Default path: bf16 adj/x streaming with f32 accumulation (loose tolerance).
    out_bf16 = jax.block_until_ready(graph_convolution(x, w, b, adj))
    assert jnp.allclose(out_bf16, ref, atol=3e-1, rtol=5e-2)

    # 3) Larger N with small max_tile -> multi-block (3x3) reduction grid,
    #    minimal 128-padding (272 -> 384), resident operand, f32 path.
    N2, F_IN2, F_OUT2 = 272, 32, 64
    x2, w2, b2, adj2 = make_inputs(jax.random.PRNGKey(1), N2, F_IN2, F_OUT2)
    out2 = jax.block_until_ready(
        graph_convolution(x2, w2, b2, adj2, use_bf16=False, max_tile=128))
    ref2 = reference(x2, w2, b2, adj2)
    assert out2.shape == (1, N2 * F_OUT2)
    assert jnp.allclose(out2, ref2, atol=1e-3, rtol=1e-3)

    # 4) F_out < F_in -> project-before dispatch (support precomputed, adj streams
    #    against the narrow f_out-wide operand, accumulating straight into out).
    N3, F_IN3, F_OUT3 = 272, 200, 64
    x3, w3, b3, adj3 = make_inputs(jax.random.PRNGKey(2), N3, F_IN3, F_OUT3)
    out3 = jax.block_until_ready(
        graph_convolution(x3, w3, b3, adj3, use_bf16=False, max_tile=128))
    ref3 = reference(x3, w3, b3, adj3)
    assert out3.shape == (1, N3 * F_OUT3)
    assert jnp.allclose(out3, ref3, atol=1e-3, rtol=1e-3)

    print("KERNEL_OK")
</pallas_src>

<mosaic_0001>
module attributes {stable_mosaic.version = 11 : i64} {
  func.func @kernel(%arg0: i32, %arg1: i32, %arg2: memref<16x16xf32, #tpu.memory_space<vmem>>, %arg3: memref<16x128xf32, #tpu.memory_space<vmem>>, %arg4: memref<128x128xf32, #tpu.memory_space<vmem>>, %arg5: memref<16x128xf32, #tpu.memory_space<vmem>>, %arg6: memref<16x128xf32, #tpu.memory_space<vmem>>) attributes {dimension_semantics = [#tpu.dimension_semantics<parallel>, #tpu.dimension_semantics<arbitrary>], iteration_bounds = array<i64: 1, 1>, scalar_prefetch = 0 : i64, scratch_operands = 1 : i64, tpu.core_type = #tpu.core_type<tc>, window_params = [{transform_indices = @transform_0, window_bounds = array<i64: 16, 16>}, {pipeline_mode = #tpu.pipeline_mode<synchronous>, transform_indices = @transform_1, window_bounds = array<i64: 16, 128>}, {pipeline_mode = #tpu.pipeline_mode<synchronous>, transform_indices = @transform_2, window_bounds = array<i64: 128, 128>}, {transform_indices = @transform_3, window_bounds = array<i64: 16, 128>}]} {
    %c0_i32 = arith.constant 0 : i32
    %0 = arith.cmpi eq, %arg1, %c0_i32 : i32
    %1 = arith.extui %0 : i1 to i32
    %c0_i32_0 = arith.constant 0 : i32
    %2 = arith.cmpi ne, %1, %c0_i32_0 : i32
    scf.if %2 {
      %cst_9 = arith.constant 0.000000e+00 : f32
      %15 = vector.broadcast %cst_9 : f32 to vector<16x128xf32>
      %c0_10 = arith.constant 0 : index
      %c0_11 = arith.constant 0 : index
      %16 = vector.load %arg6[%c0_10, %c0_11] : memref<16x128xf32, #tpu.memory_space<vmem>>, vector<16x128xf32>
      tpu.vector_store %arg6[%c0_10, %c0_11], %15 {strides = array<i32>} : memref<16x128xf32, #tpu.memory_space<vmem>>, vector<16x128xf32>,
    } else {
    }
    %c0 = arith.constant 0 : index
    %c0_1 = arith.constant 0 : index
    %3 = vector.load %arg6[%c0, %c0_1] : memref<16x128xf32, #tpu.memory_space<vmem>>, vector<16x128xf32>
    %c0_2 = arith.constant 0 : index
    %c0_3 = arith.constant 0 : index
    %4 = vector.load %arg2[%c0_2, %c0_3] : memref<16x16xf32, #tpu.memory_space<vmem>>, vector<16x16xf32>
    %c16_i32 = arith.constant 16 : i32
    %5 = arith.muli %arg1, %c16_i32 : i32
    %6 = tpu.assume_multiple %5, 16 : i32
    %7 = arith.index_cast %6 : i32 to index
    %c0_4 = arith.constant 0 : index
    %8 = vector.load %arg3[%7, %c0_4] : memref<16x128xf32, #tpu.memory_space<vmem>>, vector<16x128xf32>
    %cst = arith.constant dense<0.000000e+00> : vector<16x128xf32>
    %9 = tpu.matmul %4, %8, %cst {dimension_numbers = #tpu.dot_dimension_numbers<[1], [0], [0], [1], [0, 0, 1, 1], [], []>} : vector<16x16xf32>, vector<16x128xf32>, vector<16x128xf32> -> vector<16x128xf32>
    %10 = arith.addf %3, %9 : vector<16x128xf32>
    %c0_5 = arith.constant 0 : index
    %c0_6 = arith.constant 0 : index
    %11 = vector.load %arg6[%c0_5, %c0_6] : memref<16x128xf32, #tpu.memory_space<vmem>>, vector<16x128xf32>
    tpu.vector_store %arg6[%c0_5, %c0_6], %10 {strides = array<i32>} : memref<16x128xf32, #tpu.memory_space<vmem>>, vector<16x128xf32>,
    %c0_i32_7 = arith.constant 0 : i32
    %12 = arith.cmpi eq, %arg1, %c0_i32_7 : i32
    %13 = arith.extui %12 : i1 to i32
    %c0_i32_8 = arith.constant 0 : i32
    %14 = arith.cmpi ne, %13, %c0_i32_8 : i32
    scf.if %14 {
      %c0_9 = arith.constant 0 : index
      %c0_10 = arith.constant 0 : index
      %15 = vector.load %arg6[%c0_9, %c0_10] : memref<16x128xf32, #tpu.memory_space<vmem>>, vector<16x128xf32>
      %c0_11 = arith.constant 0 : index
      %c0_12 = arith.constant 0 : index
      %16 = vector.load %arg4[%c0_11, %c0_12] : memref<128x128xf32, #tpu.memory_space<vmem>>, vector<128x128xf32>
      %cst_13 = arith.constant dense<0.000000e+00> : vector<16x128xf32>
      %17 = tpu.matmul %15, %16, %cst_13 {dimension_numbers = #tpu.dot_dimension_numbers<[1], [0], [0], [1], [0, 0, 1, 1], [], []>} : vector<16x128xf32>, vector<128x128xf32>, vector<16x128xf32> -> vector<16x128xf32>
      %c0_14 = arith.constant 0 : index
      %c0_15 = arith.constant 0 : index
      %18 = vector.load %arg5[%c0_14, %c0_15] : memref<16x128xf32, #tpu.memory_space<vmem>>, vector<16x128xf32>
      tpu.vector_store %arg5[%c0_14, %c0_15], %17 {strides = array<i32>} : memref<16x128xf32, #tpu.memory_space<vmem>>, vector<16x128xf32>,
    } else {
    }
    return
  }
  func.func @transform_0(%arg0: i32, %arg1: i32) -> (i32, i32) {
    %c0_i32 = arith.constant 0 : i32
    return %arg0, %arg1 : i32, i32
  }
  func.func @transform_1(%arg0: i32, %arg1: i32) -> (i32, i32) {
    %c0_i32 = arith.constant 0 : i32
    %c0_i32_0 = arith.constant 0 : i32
    %c0_i32_1 = arith.constant 0 : i32
    return %c0_i32, %c0_i32_0 : i32, i32
  }
  func.func @transform_2(%arg0: i32, %arg1: i32) -> (i32, i32) {
    %c0_i32 = arith.constant 0 : i32
    %c0_i32_0 = arith.constant 0 : i32
    %c0_i32_1 = arith.constant 0 : i32
    return %c0_i32, %c0_i32_0 : i32, i32
  }
  func.func @transform_3(%arg0: i32, %arg1: i32) -> (i32, i32) {
    %c0_i32 = arith.constant 0 : i32
    %c0_i32_0 = arith.constant 0 : i32
    return %arg0, %c0_i32 : i32, i32
  }
}

</mosaic_0001>

<llo_original>
// kernel: graph_convolution.1
$region0: #{graph_convolution.1}
  #allocation0 [shape = 'u32[]', space=smem, size = 0x4, offset = 0x4, fixed_abs, tag = 'smem constant byte address 0x4 - core index']
  #allocation1 [shape = 'u32[144,128]{1,0:T(1,128)}', space=vmem, size = 0x12000, scoped, tag = 'internal scratch']
  #allocation2 [shape = 'f32[16,128]{1,0:T(8,128)}', space=vmem, size = 0x2000, scoped, tag = 'scratch operand']
  %s0 = inlined_call_operand.vmem [shape: f32[16,16], index: 0, kind: input, shape index: {}]
  %s1 = inlined_call_operand.vmem [shape: f32[16,128], index: 1, kind: input, shape index: {}]
  %s2 = inlined_call_operand.vmem [shape: f32[128,128], index: 2, kind: input, shape index: {}]
  %s3 = inlined_call_operand.vmem [shape: f32[16,128], index: 3, kind: output, shape index: {}]
  %s4 = sld [smem:[#allocation0]]
  $region30: #{graph_convolution.1} parent=0
    _
  %s6 = ssub.s32 1, %s4
  %s7 = scalar_select 0, %s6, %s4
  // Predicated region
  $region2: #{graph_convolution.1} parent=0 // pred_check
    _
  $region3: #{graph_convolution.1} parent=0 // pred_check_branch
    %9 = sbr.rel (0) target = $region5
  $region4: #{graph_convolution.1} parent=0 // pred_region
    _
  $region5: #{graph_convolution.1} parent=0 // pred_fallthru
    _
  // Predicated region
  $region6: #{graph_convolution.1} parent=0 // pred_check
    _
  $region7: #{graph_convolution.1} parent=0 // pred_check_branch
    %11 = sbr.rel (0) target = $region9
  $region8: #{graph_convolution.1} parent=0 // pred_region
    _
  $region9: #{graph_convolution.1} parent=0 // pred_fallthru
    _
  // Predicated region
  $region10: #{graph_convolution.1} parent=0 // pred_check
    _
  $region11: #{graph_convolution.1} parent=0 // pred_check_branch
    %13 = sbr.rel (0) target = $region13
  $region12: #{graph_convolution.1} parent=0 // pred_region
    _
  $region13: #{graph_convolution.1} parent=0 // pred_fallthru
    _
  %p14 = scmp.eq.s32.totalorder 0, 0
  // Predicated region
  $region14: #{graph_convolution.1} parent=0 // pred_check
    %p15 = pneg %p14
  $region15: #{graph_convolution.1} parent=0 // pred_check_branch
    %17 = sbr.rel (%p15) target = $region17
  $region16: #{graph_convolution.1} parent=0 // pred_region
    %18 = vst [vmem:[#allocation2] sm:$0xff] 0.0
    %19 = vst [vmem:[#allocation2 + $0x8] sm:$0xff] 0.0
  $region17: #{graph_convolution.1} parent=0 // pred_fallthru
    _
  %v20 = vld [vmem:[#allocation2] sm:$0xff]
  %v21 = vld [vmem:[#allocation2 + $0x8] sm:$0xff]
  %v22 = vld [vmem:[%s0] sm:$0xff]
  %v23 = vld [vmem:[%s0 + $0x8] sm:$0xff]
  %s24 = smul.u32 0, 16
  %s25 = scalar_lea.vmem %s1, %s24
  %v26 = vld [vmem:[%s25] sm:$0xff]
  %v27 = vld [vmem:[%s25 + $0x8] sm:$0xff]
  %vm28 = vcmask 130048
  %v30 = vsel %vm28, %v22, 0
  %v33 = vsel %vm28, %v23, 0
  %35 = vmatprep.subr.mxu0 0.0
  %36 = vmatpush1.msra.mxu0 %v26
  %37 = vmatprep.subr.mxu0 0.0
  %38 = vmatpush1.msra.mxu0 %v27
  %39 = vmatprep.subr.mxu0 0.0
  %40 = vmatpush1.msra.mxu0 0.0
  %41 = vmatprep.subr.mxu0 0.0
  %42 = vmatpush1.msra.mxu0 0.0
  %43 = vmatprep.subr.mxu0 0.0
  %44 = vmatpush1.msra.mxu0 0.0
  %45 = vmatprep.subr.mxu0 0.0
  %46 = vmatpush1.msra.mxu0 0.0
  %47 = vmatprep.subr.mxu0 0.0
  %48 = vmatpush1.msra.mxu0 0.0
  %49 = vmatprep.subr.mxu0 0.0
  %50 = vmatpush1.msra.mxu0 0.0
  %51 = vmatprep.subr.mxu0 0.0
  %52 = vmatpush1.msra.mxu0 0.0
  %53 = vmatprep.subr.mxu0 0.0
  %54 = vmatpush1.msra.mxu0 0.0
  %55 = vmatprep.subr.mxu0 0.0
  %56 = vmatpush1.msra.mxu0 0.0
  %57 = vmatprep.subr.mxu0 0.0
  %58 = vmatpush1.msra.mxu0 0.0
  %59 = vmatprep.subr.mxu0 0.0
  %60 = vmatpush1.msra.mxu0 0.0
  %61 = vmatprep.subr.mxu0 0.0
  %62 = vmatpush1.msra.mxu0 0.0
  %63 = vmatprep.subr.mxu0 0.0
  %64 = vmatpush1.msra.mxu0 0.0
  %65 = vmatprep.subr.mxu0 0.0
  %66 = vmatpush1.msra.mxu0 0.0
  %67 = vmatprep.subr.mxu0 0.0
  %68 = vmatpush1.msra.mxu0 0.0
  %69 = vmatprep.subr.mxu0 0.0
  %70 = vmatpush1.msra.mxu0 0.0
  %71 = vmatprep.subr.mxu0 0.0
  %72 = vmatpush1.msra.mxu0 0.0
  %73 = vmatprep.subr.mxu0 0.0
  %74 = vmatpush1.msra.mxu0 0.0
  %75 = vmatprep.subr.mxu0 0.0
  %76 = vmatpush1.msra.mxu0 0.0
  %77 = vmatprep.subr.mxu0 0.0
  %78 = vmatpush1.msra.mxu0 0.0
  %79 = vmatprep.subr.mxu0 0.0
  %80 = vmatpush1.msra.mxu0 0.0
  %81 = vmatprep.subr.mxu0 0.0
  %82 = vmatpush1.msra.mxu0 0.0
  %83 = vmatprep.subr.mxu0 0.0
  %84 = vmatpush1.msra.mxu0 0.0
  %85 = vmatprep.subr.mxu0 0.0
  %86 = vmatpush1.msra.mxu0 0.0
  %87 = vmatprep.subr.mxu0 0.0
  %88 = vmatpush1.msra.mxu0 0.0
  %89 = vmatprep.subr.mxu0 0.0
  %90 = vmatpush1.msra.mxu0 0.0
  %91 = vmatprep.subr.mxu0 0.0
  %92 = vmatpush1.msra.mxu0 0.0
  %93 = vmatprep.subr.mxu0 0.0
  %94 = vmatpush1.msra.mxu0 0.0
  %95 = vmatprep.subr.mxu0 0.0
  %96 = vmatpush1.msra.mxu0 0.0
  %97 = vmatprep.subr.mxu0 0.0
  %98 = vmatpush1.msra.mxu0 0.0
  %99 = vmatprep.mubr.f32.mxu0 0.0
  %100 = vmatmul.mubr.f32.gmra.mrb[0].mxu0 %v30
  %v101 = vpop.f32.mrb[0].mxu0
  %v102 = vadd.f32 0.0, %v101
  %v103 = vpop.f32.mrb[0].mxu0
  %104 = vmatprep.mubr.f32.mxu0 0.0
  %105 = vmatmul.mubr.f32.gmra.mrb[0].mxu0 %v33
  %v106 = vpop.f32.mrb[0].mxu0
  %v107 = vadd.f32 0.0, %v106
  %v108 = vpop.f32.mrb[0].mxu0
  %109 = vdwg.mxu0
  %v110 = vadd.f32 %v20, %v102
  %v111 = vadd.f32 %v21, %v107
  %112 = vst [vmem:[#allocation2] sm:$0xff] %v110
  %113 = vst [vmem:[#allocation2 + $0x8] sm:$0xff] %v111
  // Predicated region
  $region18: #{graph_convolution.1} parent=0 // pred_check
    %p114 = pneg %p14
  $region19: #{graph_convolution.1} parent=0 // pred_check_branch
    %116 = sbr.rel (%p114) target = $region21
  $region20: #{graph_convolution.1} parent=0 // pred_region
    %v117 = vld [vmem:[#allocation2] sm:$0xff]
    %v118 = vld [vmem:[#allocation2 + $0x8] sm:$0xff]
    %v119 = vld [vmem:[%s2] sm:$0xff]
    %v120 = vld [vmem:[%s2 + $0x8] sm:$0xff]
    %v121 = vld [vmem:[%s2 + $0x10] sm:$0xff]
    %v122 = vld [vmem:[%s2 + $0x18] sm:$0xff]
    %v123 = vld [vmem:[%s2 + $0x20] sm:$0xff]
    %v124 = vld [vmem:[%s2 + $0x28] sm:$0xff]
    %v125 = vld [vmem:[%s2 + $0x30] sm:$0xff]
    %v126 = vld [vmem:[%s2 + $0x38] sm:$0xff]
    %v127 = vld [vmem:[%s2 + $0x40] sm:$0xff]
    %v128 = vld [vmem:[%s2 + $0x48] sm:$0xff]
    %v129 = vld [vmem:[%s2 + $0x50] sm:$0xff]
    %v130 = vld [vmem:[%s2 + $0x58] sm:$0xff]
    %v131 = vld [vmem:[%s2 + $0x60] sm:$0xff]
    %v132 = vld [vmem:[%s2 + $0x68] sm:$0xff]
    %v133 = vld [vmem:[%s2 + $0x70] sm:$0xff]
    %v134 = vld [vmem:[%s2 + $0x78] sm:$0xff]
    %135 = vmatprep.subr.mxu0 0.0
    %136 = vmatpush1.msra.mxu0 %v119
    %137 = vmatprep.subr.mxu0 0.0
    %138 = vmatpush1.msra.mxu0 %v120
    %139 = vmatprep.subr.mxu0 0.0
    %140 = vmatpush1.msra.mxu0 %v121
    %141 = vmatprep.subr.mxu0 0.0
    %142 = vmatpush1.msra.mxu0 %v122
    %143 = vmatprep.subr.mxu0 0.0
    %144 = vmatpush1.msra.mxu0 %v123
    %145 = vmatprep.subr.mxu0 0.0
    %146 = vmatpush1.msra.mxu0 %v124
    %147 = vmatprep.subr.mxu0 0.0
    %148 = vmatpush1.msra.mxu0 %v125
    %149 = vmatprep.subr.mxu0 0.0
    %150 = vmatpush1.msra.mxu0 %v126
    %151 = vmatprep.subr.mxu0 0.0
    %152 = vmatpush1.msra.mxu0 %v127
    %153 = vmatprep.subr.mxu0 0.0
    %154 = vmatpush1.msra.mxu0 %v128
    %155 = vmatprep.subr.mxu0 0.0
    %156 = vmatpush1.msra.mxu0 %v129
    %157 = vmatprep.subr.mxu0 0.0
    %158 = vmatpush1.msra.mxu0 %v130
    %159 = vmatprep.subr.mxu0 0.0
    %160 = vmatpush1.msra.mxu0 %v131
    %161 = vmatprep.subr.mxu0 0.0
    %162 = vmatpush1.msra.mxu0 %v132
    %163 = vmatprep.subr.mxu0 0.0
    %164 = vmatpush1.msra.mxu0 %v133
    %165 = vmatprep.subr.mxu0 0.0
    %166 = vmatpush1.msra.mxu0 %v134
    %167 = vmatprep.subr.mxu0 0.0
    %168 = vmatpush1.msra.mxu0 0.0
    %169 = vmatprep.subr.mxu0 0.0
    %170 = vmatpush1.msra.mxu0 0.0
    %171 = vmatprep.subr.mxu0 0.0
    %172 = vmatpush1.msra.mxu0 0.0
    %173 = vmatprep.subr.mxu0 0.0
    %174 = vmatpush1.msra.mxu0 0.0
    %175 = vmatprep.subr.mxu0 0.0
    %176 = vmatpush1.msra.mxu0 0.0
    %177 = vmatprep.subr.mxu0 0.0
    %178 = vmatpush1.msra.mxu0 0.0
    %179 = vmatprep.subr.mxu0 0.0
    %180 = vmatpush1.msra.mxu0 0.0
    %181 = vmatprep.subr.mxu0 0.0
    %182 = vmatpush1.msra.mxu0 0.0
    %183 = vmatprep.subr.mxu0 0.0
    %184 = vmatpush1.msra.mxu0 0.0
    %185 = vmatprep.subr.mxu0 0.0
    %186 = vmatpush1.msra.mxu0 0.0
    %187 = vmatprep.subr.mxu0 0.0
    %188 = vmatpush1.msra.mxu0 0.0
    %189 = vmatprep.subr.mxu0 0.0
    %190 = vmatpush1.msra.mxu0 0.0
    %191 = vmatprep.subr.mxu0 0.0
    %192 = vmatpush1.msra.mxu0 0.0
    %193 = vmatprep.subr.mxu0 0.0
    %194 = vmatpush1.msra.mxu0 0.0
    %195 = vmatprep.subr.mxu0 0.0
    %196 = vmatpush1.msra.mxu0 0.0
    %197 = vmatprep.subr.mxu0 0.0
    %198 = vmatpush1.msra.mxu0 0.0
    %199 = vmatprep.mubr.f32.mxu0 0.0
    %200 = vmatmul.mubr.f32.gmra.mrb[0].mxu0 %v117
    %v201 = vpop.f32.mrb[0].mxu0
    %v202 = vadd.f32 0.0, %v201
    %v203 = vpop.f32.mrb[0].mxu0
    %204 = vmatprep.mubr.f32.mxu0 0.0
    %205 = vmatmul.mubr.f32.gmra.mrb[0].mxu0 %v118
    %v206 = vpop.f32.mrb[0].mxu0
    %v207 = vadd.f32 0.0, %v206
    %v208 = vpop.f32.mrb[0].mxu0
    %209 = vdwg.mxu0
    %210 = vst [vmem:[%s3] sm:$0xff] %v202
    %211 = vst [vmem:[%s3 + $0x8] sm:$0xff] %v207
  $region21: #{graph_convolution.1} parent=0 // pred_fallthru
    _
  // Predicated region
  $region22: #{graph_convolution.1} parent=0 // pred_check
    _
  $region23: #{graph_convolution.1} parent=0 // pred_check_branch
    %213 = sbr.rel (0) target = $region25
  $region24: #{graph_convolution.1} parent=0 // pred_region
    _
  $region25: #{graph_convolution.1} parent=0 // pred_fallthru
    _
  // Predicated region
  $region26: #{graph_convolution.1} parent=0 // pred_check
    _
  $region27: #{graph_convolution.1} parent=0 // pred_check_branch
    %215 = sbr.rel (0) target = $region29
  $region28: #{graph_convolution.1} parent=0 // pred_region
    _
  $region29: #{graph_convolution.1} parent=0 // pred_fallthru
    _

</llo_original>
